<compile_context>
chip_gen: v6e
topology: v6e:2x2x1
jax: 0.10.0
libtpu: 0.0.40
codegen_flags: <defaults>
</compile_context>

<pallas_src>
import functools

import jax
import jax.numpy as jnp
from jax import lax
from jax.experimental import pallas as pl
from jax.experimental.pallas import tpu as pltpu

NEG_SLOPE = 1.0   # nn.LeakyReLU(True) binds negative_slope = True == 1.0 (identity)
BN_EPS = 1e-5


def _round_up(x, m):
    return (x + m - 1) // m * m


def _make_kernel(KH, KW, C_in, C_out, W_pad, H_v, W_v, L, neg_slope):
    """Fused conv + BN-shift (+ LeakyReLU) kernel for static geometry."""

    def kernel(x_ref, w_ref, shift_ref, o_ref, xs_ref):
        # x_ref:     (1, C_in, Lp)         flat zero-padded image (compute dtype)
        # w_ref:     (C_out, KH*KW*C_in)   BN-scale-folded conv weights
        # shift_ref: (C_out, 1)            folded BN shift (f32)
        # o_ref:     (1, C_out, H_v, W_v)  cropped dense (stride-1) output
        # xs_ref:    (KH*KW*C_in, L)       VMEM scratch: stacked shifted activation
        #
        # Stage the KH*KW shifted slices ONCE into the aligned stacked-activation
        # scratch (pay the unaligned lane shift once, feed the MXU from it).
        for kh in range(KH):
            for kw in range(KW):
                t = kh * KW + kw
                off = kh * W_pad + kw
                xs_ref[t * C_in:(t + 1) * C_in, :] = x_ref[0, :, off:off + L]

        # Single fused-K matmul: contraction K = KH*KW*C_in, f32 MXU accumulation.
        acc = jnp.dot(w_ref[...], xs_ref[...],
                      preferred_element_type=jnp.float32)        # (C_out, L)
        y = acc + shift_ref[...]                                  # + (C_out, 1)
        if neg_slope != 1.0:                                      # slope 1.0 == identity
            y = jnp.where(y >= 0, y, neg_slope * y)

        # In-kernel crop of the KW-1 junk "wide" columns, store in compute dtype.
        y3 = y.reshape(C_out, H_v, W_pad)
        o_ref[0] = y3[:, :, :W_v].astype(o_ref.dtype)

    return kernel


@functools.partial(jax.jit, static_argnames=("padding", "stride", "compute_dtype"))
def conv_block_forward(x_nchw, conv_w, gamma, beta, run_mean, run_var,
                       *, padding, stride=1, compute_dtype=jnp.bfloat16):
    """ConvBlock forward.  x_nchw: (N, C_in, H, W); conv_w: (C_out, C_in, KH, KW)."""
    N, C_in, H, W = x_nchw.shape
    C_out, _, KH, KW = conv_w.shape
    H_pad, W_pad = H + 2 * padding, W + 2 * padding
    H_v, W_v = H_pad - KH + 1, W_pad - KW + 1      # dense (stride-1) valid extent
    L = H_v * W_pad                                # "wide" rows (W_pad cols per out row)
    K = KH * KW * C_in                             # fused contraction depth
    # tail zeros keep the last tap slices in-bounds (and lane-align the row pitch)
    Lp = _round_up(H_pad * W_pad + KW - 1, 128)

    # ---- prep: spatial pad + free reshape + tail pad; stays NCHW, no im2col ----
    xp = jnp.pad(x_nchw.astype(compute_dtype),
                 ((0, 0), (0, 0), (padding, padding), (padding, padding)))
    x_flat = jnp.pad(xp.reshape(N, C_in, H_pad * W_pad),
                     ((0, 0), (0, 0), (0, Lp - H_pad * W_pad)))

    # fold BatchNorm (eval mode) into the weights / a per-channel shift
    scale = gamma / jnp.sqrt(run_var + BN_EPS)                     # (C_out,)
    w_scaled = conv_w * scale[:, None, None, None]
    # row index of the stacked activation is (kh*KW + kw)*C_in + ci
    w2d = jnp.transpose(w_scaled, (0, 2, 3, 1)).reshape(C_out, K).astype(compute_dtype)
    shift = (beta - run_mean * scale).reshape(C_out, 1).astype(jnp.float32)

    kernel = _make_kernel(KH, KW, C_in, C_out, W_pad, H_v, W_v, L, NEG_SLOPE)

    # VMEM sizing, gated on the actual device's VMEM capacity.
    esz = jnp.dtype(compute_dtype).itemsize
    need = (2 * C_in * Lp * esz                 # double-buffered input image
            + K * L * esz                       # stacked-activation scratch
            + 2 * C_out * H_v * W_v * esz       # double-buffered (bf16) output block
            + 4 * C_out * L * 4                 # f32 acc / crop temporaries (generous)
            + C_out * K * esz + C_out * 4)      # weights + shift
    try:
        vmem_cap = int(pltpu.get_tpu_info().vmem_capacity_bytes)
    except Exception:
        vmem_cap = 64 << 20
    vmem_limit = int(min(max(32 << 20, 2 * need), int(vmem_cap * 0.85)))

    out = pl.pallas_call(
        kernel,
        out_shape=jax.ShapeDtypeStruct((N, C_out, H_v, W_v), compute_dtype),
        grid_spec=pltpu.PrefetchScalarGridSpec(
            num_scalar_prefetch=0,
            grid=(N,),
            in_specs=[
                pl.BlockSpec((1, C_in, Lp), lambda n: (n, 0, 0)),
                pl.BlockSpec((C_out, K), lambda n: (0, 0)),
                pl.BlockSpec((C_out, 1), lambda n: (0, 0)),
            ],
            out_specs=pl.BlockSpec((1, C_out, H_v, W_v), lambda n: (n, 0, 0, 0)),
            scratch_shapes=[pltpu.VMEM((K, L), compute_dtype)],
        ),
        compiler_params=pltpu.CompilerParams(
            dimension_semantics=("parallel",),
            vmem_limit_bytes=vmem_limit),
    )(x_flat, w2d, shift)

    if stride > 1:
        # TODO(synk): move the stride into the kernel (polyphase) to skip ~stride^2 work.
        out = out[:, :, ::stride, ::stride]
    return out


def _reference(x_nchw, conv_w, gamma, beta, run_mean, run_var, padding, stride):
    # plain-JAX reference for sanity checking
    y = lax.conv_general_dilated(
        x_nchw.astype(jnp.float32), conv_w.astype(jnp.float32),
        window_strides=(stride, stride),
        padding=[(padding, padding), (padding, padding)],
        dimension_numbers=("NCHW", "OIHW", "NCHW"))
    scale = gamma / jnp.sqrt(run_var + BN_EPS)
    shift = beta - run_mean * scale
    y = y * scale[None, :, None, None] + shift[None, :, None, None]
    return jnp.where(y >= 0, y, NEG_SLOPE * y)


if __name__ == "__main__":
    # ConvBlock(in_channels=4, out_channels=8, kernel_size=3, padding=1, stride=1)
    N, C_in, H, W = 2, 4, 16, 16
    C_out, KH, KW = 8, 3, 3

    key = jax.random.PRNGKey(0)
    kx, kwt, kg, kb, km, kv = jax.random.split(key, 6)
    x = jax.random.normal(kx, (N, C_in, H, W), dtype=jnp.float32)
    conv_w = jax.random.normal(kwt, (C_out, C_in, KH, KW), dtype=jnp.float32) * 0.1
    gamma = 1.0 + 0.1 * jax.random.normal(kg, (C_out,), dtype=jnp.float32)
    beta = 0.1 * jax.random.normal(kb, (C_out,), dtype=jnp.float32)
    run_mean = 0.1 * jax.random.normal(km, (C_out,), dtype=jnp.float32)
    run_var = jnp.abs(jax.random.normal(kv, (C_out,), dtype=jnp.float32)) + 0.5

    # --- stride=1, f32 operand path (checks the fused conv/BN indexing math) ---
    ref = _reference(x, conv_w, gamma, beta, run_mean, run_var, 1, 1)
    out_f32 = conv_block_forward(x, conv_w, gamma, beta, run_mean, run_var,
                                 padding=1, stride=1, compute_dtype=jnp.float32)
    jax.block_until_ready(out_f32)
    assert out_f32.shape == (N, C_out, H, W), out_f32.shape
    err = float(jnp.max(jnp.abs(out_f32.astype(jnp.float32) - ref)))
    assert err < 2e-2, err   # tolerant of MXU bf16-pass rounding on f32 operands

    # --- stride=1, default bf16 operands + bf16 output (f32 MXU accumulation) ---
    out_bf16 = conv_block_forward(x, conv_w, gamma, beta, run_mean, run_var,
                                  padding=1, stride=1)
    jax.block_until_ready(out_bf16)
    assert out_bf16.shape == (N, C_out, H, W), out_bf16.shape
    err = float(jnp.max(jnp.abs(out_bf16.astype(jnp.float32) - ref)))
    assert err < 6e-2, err

    # --- stride=2 path (dense in-kernel output, wrapper subsample) ---
    ref2 = _reference(x, conv_w, gamma, beta, run_mean, run_var, 1, 2)
    out_s2 = conv_block_forward(x, conv_w, gamma, beta, run_mean, run_var,
                                padding=1, stride=2, compute_dtype=jnp.float32)
    jax.block_until_ready(out_s2)
    assert out_s2.shape == ref2.shape == (N, C_out, 8, 8), (out_s2.shape, ref2.shape)
    err = float(jnp.max(jnp.abs(out_s2.astype(jnp.float32) - ref2)))
    assert err < 2e-2, err

    print("KERNEL_OK")
</pallas_src>

<mosaic_0001>
module attributes {stable_mosaic.version = 11 : i64} {
  func.func @kernel(%arg0: i32, %arg1: memref<1x4x384xf32, #tpu.memory_space<vmem>>, %arg2: memref<8x36xf32, #tpu.memory_space<vmem>>, %arg3: memref<8x1xf32, #tpu.memory_space<vmem>>, %arg4: memref<1x8x16x16xf32, #tpu.memory_space<vmem>>, %arg5: memref<36x288xf32, #tpu.memory_space<vmem>>) attributes {dimension_semantics = [#tpu.dimension_semantics<parallel>], iteration_bounds = array<i64: 2>, scalar_prefetch = 0 : i64, scratch_operands = 1 : i64, tpu.core_type = #tpu.core_type<tc>, window_params = [{transform_indices = @transform_0, window_bounds = array<i64: 1, 4, 384>}, {pipeline_mode = #tpu.pipeline_mode<synchronous>, transform_indices = @transform_1, window_bounds = array<i64: 8, 36>}, {pipeline_mode = #tpu.pipeline_mode<synchronous>, transform_indices = @transform_2, window_bounds = array<i64: 8, 1>}, {transform_indices = @transform_3, window_bounds = array<i64: 1, 8, 16, 16>}]} {
    %c0 = arith.constant 0 : index
    %c0_0 = arith.constant 0 : index
    %c0_1 = arith.constant 0 : index
    %0 = vector.load %arg1[%c0, %c0_0, %c0_1] : memref<1x4x384xf32, #tpu.memory_space<vmem>>, vector<1x4x288xf32>
    %1 = vector.shape_cast %0 : vector<1x4x288xf32> to vector<4x288xf32>
    %c0_2 = arith.constant 0 : index
    %c0_3 = arith.constant 0 : index
    %2 = vector.load %arg5[%c0_2, %c0_3] : memref<36x288xf32, #tpu.memory_space<vmem>>, vector<4x288xf32>
    tpu.vector_store %arg5[%c0_2, %c0_3], %1 {strides = array<i32>} : memref<36x288xf32, #tpu.memory_space<vmem>>, vector<4x288xf32>,
    %c0_4 = arith.constant 0 : index
    %c0_5 = arith.constant 0 : index
    %c1 = arith.constant 1 : index
    %3 = vector.load %arg1[%c0_4, %c0_5, %c1] : memref<1x4x384xf32, #tpu.memory_space<vmem>>, vector<1x4x288xf32>
    %4 = vector.shape_cast %3 : vector<1x4x288xf32> to vector<4x288xf32>
    %c4 = arith.constant 4 : index
    %c0_6 = arith.constant 0 : index
    %5 = vector.load %arg5[%c4, %c0_6] : memref<36x288xf32, #tpu.memory_space<vmem>>, vector<4x288xf32>
    tpu.vector_store %arg5[%c4, %c0_6], %4 {strides = array<i32>} : memref<36x288xf32, #tpu.memory_space<vmem>>, vector<4x288xf32>,
    %c0_7 = arith.constant 0 : index
    %c0_8 = arith.constant 0 : index
    %c2 = arith.constant 2 : index
    %6 = vector.load %arg1[%c0_7, %c0_8, %c2] : memref<1x4x384xf32, #tpu.memory_space<vmem>>, vector<1x4x288xf32>
    %7 = vector.shape_cast %6 : vector<1x4x288xf32> to vector<4x288xf32>
    %c8 = arith.constant 8 : index
    %c0_9 = arith.constant 0 : index
    %8 = vector.load %arg5[%c8, %c0_9] : memref<36x288xf32, #tpu.memory_space<vmem>>, vector<4x288xf32>
    tpu.vector_store %arg5[%c8, %c0_9], %7 {strides = array<i32>} : memref<36x288xf32, #tpu.memory_space<vmem>>, vector<4x288xf32>,
    %c0_10 = arith.constant 0 : index
    %c0_11 = arith.constant 0 : index
    %c18 = arith.constant 18 : index
    %9 = vector.load %arg1[%c0_10, %c0_11, %c18] : memref<1x4x384xf32, #tpu.memory_space<vmem>>, vector<1x4x288xf32>
    %10 = vector.shape_cast %9 : vector<1x4x288xf32> to vector<4x288xf32>
    %c12 = arith.constant 12 : index
    %c0_12 = arith.constant 0 : index
    %11 = vector.load %arg5[%c12, %c0_12] : memref<36x288xf32, #tpu.memory_space<vmem>>, vector<4x288xf32>
    tpu.vector_store %arg5[%c12, %c0_12], %10 {strides = array<i32>} : memref<36x288xf32, #tpu.memory_space<vmem>>, vector<4x288xf32>,
    %c0_13 = arith.constant 0 : index
    %c0_14 = arith.constant 0 : index
    %c19 = arith.constant 19 : index
    %12 = vector.load %arg1[%c0_13, %c0_14, %c19] : memref<1x4x384xf32, #tpu.memory_space<vmem>>, vector<1x4x288xf32>
    %13 = vector.shape_cast %12 : vector<1x4x288xf32> to vector<4x288xf32>
    %c16 = arith.constant 16 : index
    %c0_15 = arith.constant 0 : index
    %14 = vector.load %arg5[%c16, %c0_15] : memref<36x288xf32, #tpu.memory_space<vmem>>, vector<4x288xf32>
    tpu.vector_store %arg5[%c16, %c0_15], %13 {strides = array<i32>} : memref<36x288xf32, #tpu.memory_space<vmem>>, vector<4x288xf32>,
    %c0_16 = arith.constant 0 : index
    %c0_17 = arith.constant 0 : index
    %c20 = arith.constant 20 : index
    %15 = vector.load %arg1[%c0_16, %c0_17, %c20] : memref<1x4x384xf32, #tpu.memory_space<vmem>>, vector<1x4x288xf32>
    %16 = vector.shape_cast %15 : vector<1x4x288xf32> to vector<4x288xf32>
    %c20_18 = arith.constant 20 : index
    %c0_19 = arith.constant 0 : index
    %17 = vector.load %arg5[%c20_18, %c0_19] : memref<36x288xf32, #tpu.memory_space<vmem>>, vector<4x288xf32>
    tpu.vector_store %arg5[%c20_18, %c0_19], %16 {strides = array<i32>} : memref<36x288xf32, #tpu.memory_space<vmem>>, vector<4x288xf32>,
    %c0_20 = arith.constant 0 : index
    %c0_21 = arith.constant 0 : index
    %c36 = arith.constant 36 : index
    %18 = vector.load %arg1[%c0_20, %c0_21, %c36] : memref<1x4x384xf32, #tpu.memory_space<vmem>>, vector<1x4x288xf32>
    %19 = vector.shape_cast %18 : vector<1x4x288xf32> to vector<4x288xf32>
    %c24 = arith.constant 24 : index
    %c0_22 = arith.constant 0 : index
    %20 = vector.load %arg5[%c24, %c0_22] : memref<36x288xf32, #tpu.memory_space<vmem>>, vector<4x288xf32>
    tpu.vector_store %arg5[%c24, %c0_22], %19 {strides = array<i32>} : memref<36x288xf32, #tpu.memory_space<vmem>>, vector<4x288xf32>,
    %c0_23 = arith.constant 0 : index
    %c0_24 = arith.constant 0 : index
    %c37 = arith.constant 37 : index
    %21 = vector.load %arg1[%c0_23, %c0_24, %c37] : memref<1x4x384xf32, #tpu.memory_space<vmem>>, vector<1x4x288xf32>
    %22 = vector.shape_cast %21 : vector<1x4x288xf32> to vector<4x288xf32>
    %c28 = arith.constant 28 : index
    %c0_25 = arith.constant 0 : index
    %23 = vector.load %arg5[%c28, %c0_25] : memref<36x288xf32, #tpu.memory_space<vmem>>, vector<4x288xf32>
    tpu.vector_store %arg5[%c28, %c0_25], %22 {strides = array<i32>} : memref<36x288xf32, #tpu.memory_space<vmem>>, vector<4x288xf32>,
    %c0_26 = arith.constant 0 : index
    %c0_27 = arith.constant 0 : index
    %c38 = arith.constant 38 : index
    %24 = vector.load %arg1[%c0_26, %c0_27, %c38] : memref<1x4x384xf32, #tpu.memory_space<vmem>>, vector<1x4x288xf32>
    %25 = vector.shape_cast %24 : vector<1x4x288xf32> to vector<4x288xf32>
    %c32 = arith.constant 32 : index
    %c0_28 = arith.constant 0 : index
    %26 = vector.load %arg5[%c32, %c0_28] : memref<36x288xf32, #tpu.memory_space<vmem>>, vector<4x288xf32>
    tpu.vector_store %arg5[%c32, %c0_28], %25 {strides = array<i32>} : memref<36x288xf32, #tpu.memory_space<vmem>>, vector<4x288xf32>,
    %c0_29 = arith.constant 0 : index
    %c0_30 = arith.constant 0 : index
    %27 = vector.load %arg2[%c0_29, %c0_30] : memref<8x36xf32, #tpu.memory_space<vmem>>, vector<8x36xf32>
    %c0_31 = arith.constant 0 : index
    %c0_32 = arith.constant 0 : index
    %28 = vector.load %arg5[%c0_31, %c0_32] : memref<36x288xf32, #tpu.memory_space<vmem>>, vector<36x288xf32>
    %cst = arith.constant dense<0.000000e+00> : vector<8x288xf32>
    %29 = tpu.matmul %27, %28, %cst {dimension_numbers = #tpu.dot_dimension_numbers<[1], [0], [0], [1], [0, 0, 1, 1], [], []>} : vector<8x36xf32>, vector<36x288xf32>, vector<8x288xf32> -> vector<8x288xf32>
    %c0_33 = arith.constant 0 : index
    %c0_34 = arith.constant 0 : index
    %30 = vector.load %arg3[%c0_33, %c0_34] : memref<8x1xf32, #tpu.memory_space<vmem>>, vector<8x1xf32>
    %31 = vector.broadcast %30 : vector<8x1xf32> to vector<8x288xf32>
    %32 = arith.addf %29, %31 : vector<8x288xf32>
    %33 = vector.shape_cast %32 : vector<8x288xf32> to vector<8x16x18xf32>
    %34 = vector.extract_strided_slice %33 {offsets = [0, 0, 0], sizes = [8, 16, 16], strides = [1, 1, 1]} : vector<8x16x18xf32> to vector<8x16x16xf32>
    %c0_35 = arith.constant 0 : index
    %c0_36 = arith.constant 0 : index
    %c0_37 = arith.constant 0 : index
    %c0_38 = arith.constant 0 : index
    %35 = vector.load %arg4[%c0_35, %c0_36, %c0_37, %c0_38] : memref<1x8x16x16xf32, #tpu.memory_space<vmem>>, vector<1x8x16x16xf32>
    %36 = vector.shape_cast %35 : vector<1x8x16x16xf32> to vector<8x16x16xf32>
    %37 = vector.shape_cast %34 : vector<8x16x16xf32> to vector<1x8x16x16xf32>
    tpu.vector_store %arg4[%c0_35, %c0_36, %c0_37, %c0_38], %37 {strides = array<i32>} : memref<1x8x16x16xf32, #tpu.memory_space<vmem>>, vector<1x8x16x16xf32>,
    return
  }
  func.func @transform_0(%arg0: i32) -> (i32, i32, i32) {
    %c0_i32 = arith.constant 0 : i32
    %c0_i32_0 = arith.constant 0 : i32
    %c0_i32_1 = arith.constant 0 : i32
    return %arg0, %c0_i32, %c0_i32_0 : i32, i32, i32
  }
  func.func @transform_1(%arg0: i32) -> (i32, i32) {
    %c0_i32 = arith.constant 0 : i32
    %c0_i32_0 = arith.constant 0 : i32
    %c0_i32_1 = arith.constant 0 : i32
    return %c0_i32, %c0_i32_0 : i32, i32
  }
  func.func @transform_2(%arg0: i32) -> (i32, i32) {
    %c0_i32 = arith.constant 0 : i32
    %c0_i32_0 = arith.constant 0 : i32
    %c0_i32_1 = arith.constant 0 : i32
    return %c0_i32, %c0_i32_0 : i32, i32
  }
  func.func @transform_3(%arg0: i32) -> (i32, i32, i32, i32) {
    %c0_i32 = arith.constant 0 : i32
    %c0_i32_0 = arith.constant 0 : i32
    %c0_i32_1 = arith.constant 0 : i32
    %c0_i32_2 = arith.constant 0 : i32
    return %arg0, %c0_i32, %c0_i32_0, %c0_i32_1 : i32, i32, i32, i32
  }
}

</mosaic_0001>

<llo_original>
// kernel: conv_block_forward.1
$region0: #{conv_block_forward.1}
  #allocation0 [shape = 'u32[]', space=smem, size = 0x4, offset = 0x4, fixed_abs, tag = 'smem constant byte address 0x4 - core index']
  #allocation1 [shape = 'u32[144,128]{1,0:T(1,128)}', space=vmem, size = 0x12000, scoped, tag = 'internal scratch']
  #allocation2 [shape = 'f32[36,288]{1,0:T(8,128)}', space=vmem, size = 0xf000, scoped, tag = 'scratch operand']
  %s0 = inlined_call_operand.vmem [shape: f32[2,4,384], index: 0, kind: input, shape index: {}]
  %s1 = inlined_call_operand.vmem [shape: f32[8,36], index: 1, kind: input, shape index: {}]
  %s2 = inlined_call_operand.vmem [shape: f32[8,1], index: 2, kind: input, shape index: {}]
  %s3 = inlined_call_operand.hbm [shape: f32[2,8,16,16], index: 3, kind: output, shape index: {}]
  %s4 = sld [smem:[#allocation0]]
  $region45: #{conv_block_forward.1} parent=0
    _
  %s6 = ssub.s32 1, %s4
  %s7 = scalar_select 0, %s6, %s4
  $region1: #{conv_block_forward.1} parent=0
    #allocation3 [shape = 'u8[131072]{0}', space=vmem, size = 0x20000, scoped, tag = 'output window, operand 0']
    #allocation4 [shape = 's32[2]{0}', space=sflag, size = 0x8, scoped, tag = 'scoped memory for conv_block_forward.1']
    %8 = vsyncpa [#allocation4], 0
    %s9 = scalar_lea.sflag [#allocation4], 1
    %10 = vsyncpa %s9, 0
    loop: start=0, step=1, limit=4
    $region2: #{conv_block_forward.1} parent=1 // loop_pre_header
      _
    $region3: #{conv_block_forward.1} parent=1 // loop_header
      %s12 = sphi 0, %s16
      %p13 = scmp.ge.s32.totalorder %s12, 4
      %s22 = sphi 0, %s24
      %s25 = sphi 0, %s22
      %s26 = sphi 0, %s25
      %s42 = sphi 0, %s26
      %s46 = sphi 0, %s46
      %s48 = sphi 0, %s46
      %s49 = sphi 0, %s48
      %s63 = sphi 0, %s49
      %s67 = sphi 0, %s67
      %s69 = sphi 0, %s67
      %s70 = sphi 0, %s69
      %s84 = sphi 0, %s70
      %s90 = sphi 0, %s92
      %s93 = sphi 0, %s90
      %s94 = sphi 0, %s93
      %s110 = sphi 0, %s94
    $region4: #{conv_block_forward.1} parent=1 // loop_header_branch
      %15 = sbr.rel (%p13) target = $region8
    $region5: #{conv_block_forward.1} parent=1 // loop_body
      %s17 = ssub.s32 %s12, 1
      %s18 = ssub.s32 %s12, 2
      %s19 = sadd.s32 %s12, 1
      %s20 = ssub.s32 %s12, %s19
      %p21 = scmp.eq.s32.totalorder %s20, 0
      %s23 = sadd.s32 %s22, 1
      %s24 = scalar_select %p21, %s22, %s23
      %p27 = pneg %p21
      %p28 = scmp.eq.s32.totalorder %s12, 1
      %p29 = por %p27, %p28
      %p30 = scmp.ne.s32.totalorder %s22, %s25
      %p31 = scmp.eq.s32.totalorder %s12, 0
      %p32 = por %p30, %p31
      %p33 = scmp.ne.s32.totalorder %s22, %s25
      %p34 = scmp.eq.s32.totalorder %s17, 1
      %p35 = por %p33, %p34
      %p36 = scmp.ne.s32.totalorder %s25, %s26
      %p37 = scmp.eq.s32.totalorder %s17, 0
      %p38 = por %p36, %p37
      %p39 = scmp.ne.s32.totalorder %s25, %s26
      %p40 = scmp.eq.s32.totalorder %s18, 1
      %p41 = por %p39, %p40
      %p43 = scmp.ne.s32.totalorder %s26, %s42
      %p44 = scmp.eq.s32.totalorder %s18, 0
      %p45 = por %p43, %p44
      %s47 = sadd.s32 %s46, 1
      %p50 = scmp.eq.s32.totalorder %s12, 1
      %p51 = scmp.ne.s32.totalorder %s46, %s48
      %p52 = scmp.eq.s32.totalorder %s12, 0
      %p53 = por %p51, %p52
      %p54 = scmp.ne.s32.totalorder %s46, %s48
      %p55 = scmp.eq.s32.totalorder %s17, 1
      %p56 = por %p54, %p55
      %p57 = scmp.ne.s32.totalorder %s48, %s49
      %p58 = scmp.eq.s32.totalorder %s17, 0
      %p59 = por %p57, %p58
      %p60 = scmp.ne.s32.totalorder %s48, %s49
      %p61 = scmp.eq.s32.totalorder %s18, 1
      %p62 = por %p60, %p61
      %p64 = scmp.ne.s32.totalorder %s49, %s63
      %p65 = scmp.eq.s32.totalorder %s18, 0
      %p66 = por %p64, %p65
      %s68 = sadd.s32 %s67, 1
      %p71 = scmp.eq.s32.totalorder %s12, 1
      %p72 = scmp.ne.s32.totalorder %s67, %s69
      %p73 = scmp.eq.s32.totalorder %s12, 0
      %p74 = por %p72, %p73
      %p75 = scmp.ne.s32.totalorder %s67, %s69
      %p76 = scmp.eq.s32.totalorder %s17, 1
      %p77 = por %p75, %p76
      %p78 = scmp.ne.s32.totalorder %s69, %s70
      %p79 = scmp.eq.s32.totalorder %s17, 0
      %p80 = por %p78, %p79
      %p81 = scmp.ne.s32.totalorder %s69, %s70
      %p82 = scmp.eq.s32.totalorder %s18, 1
      %p83 = por %p81, %p82
      %p85 = scmp.ne.s32.totalorder %s70, %s84
      %p86 = scmp.eq.s32.totalorder %s18, 0
      %p87 = por %p85, %p86
      %s88 = ssub.s32 %s12, %s19
      %p89 = scmp.eq.s32.totalorder %s88, 0
      %s91 = sadd.s32 %s90, 1
      %s92 = scalar_select %p89, %s90, %s91
      %p95 = pneg %p89
      %p96 = scmp.eq.s32.totalorder %s12, 1
      %p97 = por %p95, %p96
      %p98 = scmp.ne.s32.totalorder %s90, %s93
      %p99 = scmp.eq.s32.totalorder %s12, 0
      %p100 = por %p98, %p99
      %p101 = scmp.ne.s32.totalorder %s90, %s93
      %p102 = scmp.eq.s32.totalorder %s17, 1
      %p103 = por %p101, %p102
      %p104 = scmp.ne.s32.totalorder %s93, %s94
      %p105 = scmp.eq.s32.totalorder %s17, 0
      %p106 = por %p104, %p105
      %p107 = scmp.ne.s32.totalorder %s93, %s94
      %p108 = scmp.eq.s32.totalorder %s18, 1
      %p109 = por %p107, %p108
      %p111 = scmp.ne.s32.totalorder %s94, %s110
      %p112 = scmp.eq.s32.totalorder %s18, 0
      %p113 = por %p111, %p112
      %p114 = scmp.le.s32.totalorder 1, %s12
      %p115 = scmp.lt.s32.totalorder %s12, 3
      %p116 = pnand %p114, %p115
      %p117 = pneg %p116
      // Predicated region
      $region9: #{conv_block_forward.1} parent=5 // pred_check
        _
      $region10: #{conv_block_forward.1} parent=5 // pred_check_branch
        %119 = sbr.rel (%p116) target = $region12
      $region11: #{conv_block_forward.1} parent=5 // pred_region
        %s120 = ssub.s32 %s12, 1
        // Predicated region
        $region13: #{conv_block_forward.1} parent=11 // pred_check
          %p121 = pneg %p59
        $region14: #{conv_block_forward.1} parent=11 // pred_check_branch
          %123 = sbr.rel (%p121) target = $region16
        $region15: #{conv_block_forward.1} parent=11 // pred_region
          _
        $region16: #{conv_block_forward.1} parent=11 // pred_fallthru
          _
        // Predicated region
        $region17: #{conv_block_forward.1} parent=11 // pred_check
          %p124 = pneg %p80
        $region18: #{conv_block_forward.1} parent=11 // pred_check_branch
          %126 = sbr.rel (%p124) target = $region20
        $region19: #{conv_block_forward.1} parent=11 // pred_region
          _
        $region20: #{conv_block_forward.1} parent=11 // pred_fallthru
          _
      $region12: #{conv_block_forward.1} parent=5 // pred_fallthru
        _
      %p127 = scmp.lt.s32.totalorder %s12, 2
      // Predicated region
      $region21: #{conv_block_forward.1} parent=5 // pred_check
        %p128 = pneg %p127
      $region22: #{conv_block_forward.1} parent=5 // pred_check_branch
        %130 = sbr.rel (%p128) target = $region24
      $region23: #{conv_block_forward.1} parent=5 // pred_region
        // Predicated region
        $region25: #{conv_block_forward.1} parent=23 // pred_check
          %p131 = pneg %p32
        $region26: #{conv_block_forward.1} parent=23 // pred_check_branch
          %133 = sbr.rel (%p131) target = $region28
        $region27: #{conv_block_forward.1} parent=23 // pred_region
          %p134 = scmp.lt.s32.totalorder %s12, 1
          %s135 = scalar_select %p134, %s12, 1
          %s136 = smul.addr %s135, 3
          %s137 = smul.addr %s136, 4
          %s138 = scalar_lea.vmem %s0, %s137
        $region28: #{conv_block_forward.1} parent=23 // pred_fallthru
          _
      $region24: #{conv_block_forward.1} parent=5 // pred_fallthru
        _
      %p139 = scmp.le.s32.totalorder 1, %s12
      %p140 = scmp.lt.s32.totalorder %s12, 3
      %p141 = pnand %p139, %p140
      %p142 = pneg %p141
      // Predicated region
      $region29: #{conv_block_forward.1} parent=5 // pred_check
        _
      $region30: #{conv_block_forward.1} parent=5 // pred_check_branch
        %144 = sbr.rel (%p141) target = $region32
      $region31: #{conv_block_forward.1} parent=5 // pred_region
        %s145 = ssub.s32 %s12, 1
        %p146 = scmp.lt.s32.totalorder %s17, 1
        %s147 = scalar_select %p146, %s17, 1
        %s148 = smul.addr %s147, 3
        %s149 = smul.addr %s148, 4
        %s150 = scalar_lea.vmem %s0, %s149
        %p151 = pneg %p38
        %p152 = pneg %p35
        %p153 = pneg %p59
        %p154 = pneg %p56
        %p155 = pneg %p80
        %p156 = pneg %p77
        %p157 = pneg %p106
        %p158 = pneg %p103
        %s159 = sand.u32 %s93, 1
        %s160 = scalar_lea.sflag [#allocation4], %s159
        %s161 = sand.u32 %s93, 1
        %s162 = smul.addr %s161, 128
        %s163 = scalar_lea.vmem [#allocation3], %s162
        %p164 = scmp.lt.s32.totalorder %s17, 1
        %s165 = scalar_select %p164, %s17, 1
        %s166 = smul.addr %s165, 3
        %s167 = smul.addr %s166, 4
        %s168 = scalar_lea.vmem %s0, %s167
        %v169 = vld [vmem:[%s168] sm:$0xff]
        %v170 = vld [vmem:[%s168 + $0x8] sm:$0xf]
        %v172 = vcombine.high %v169, %v169
        %174 = vst [vmem:[#allocation2] sm:$0xf] %v169
        %175 = vst [vmem:[#allocation2 + $0x8] sm:$0xf] %v172
        %vm176 = vcmask 257024
        %177 = vst.msk [vmem:[#allocation2 + $0x10] sm:$0xf] %vm176, %v170
        %v178 = vld [vmem:[%s168] sm:$0xff]
        %v179 = vld [vmem:[%s168 + $0x8] sm:$0xf]
        %v182 = vcombine.low %v178, %v178
        %v183 = vcombine.low %v179, %v179
        %184 = vrot.lane.b32.xlu0 %v182, 127
        %v185 = vpop.permute.xlu0 %184
        %186 = vrot.lane.b32.xlu0 %v178, 127
        %v187 = vpop.permute.xlu0 %186
        %188 = vrot.lane.b32.xlu0 %v183, 127
        %v189 = vpop.permute.xlu0 %188
        %vm190 = vcmask 1039360
        %v191 = vsel %vm190, %v185, %v187
        %v192 = vsel %vm190, %v187, %v189
        %196 = vst [vmem:[#allocation2] sm:$0xf0] %v191
        %197 = vst [vmem:[#allocation2 + $0x8] sm:$0xf0] %v192
        %vm198 = vcmask 261124
        %199 = vst.msk [vmem:[#allocation2 + $0x10] sm:$0xf0] %vm198, %v189
        %v200 = vld [vmem:[%s168] sm:$0xff]
        %v201 = vld [vmem:[%s168 + $0x8] sm:$0xf]
        %v204 = vcombine.high %v200, %v200
        %205 = vrot.lane.b32.xlu0 %v200, 126
        %v206 = vpop.permute.xlu0 %205
        %207 = vrot.lane.b32.xlu0 %v204, 126
        %v208 = vpop.permute.xlu0 %207
        %209 = vrot.lane.b32.xlu0 %v201, 126
        %v210 = vpop.permute.xlu0 %209
        %vm211 = vcmask 1031168
        %v212 = vsel %vm211, %v206, %v208
        %v213 = vsel %vm211, %v208, %v210
        %217 = vst [vmem:[#allocation2 + $0x18] sm:$0xf] %v212
        %218 = vst [vmem:[#allocation2 + $0x20] sm:$0xf] %v213
        %219 = vst.msk [vmem:[#allocation2 + $0x28] sm:$0xf] %vm176, %v210
        %v220 = vld [vmem:[%s168] sm:$0xff]
        %v221 = vld [vmem:[%s168 + $0x8] sm:$0xf]
        %v224 = vcombine.low %v220, %v220
        %v225 = vcombine.low %v221, %v221
        %226 = vrot.lane.b32.xlu0 %v224, 110
        %v227 = vpop.permute.xlu0 %226
        %228 = vrot.lane.b32.xlu0 %v220, 110
        %v229 = vpop.permute.xlu0 %228
        %230 = vrot.lane.b32.xlu0 %v225, 110
        %v231 = vpop.permute.xlu0 %230
        %vm232 = vcmask 900096
        %v233 = vsel %vm232, %v227, %v229
        %v234 = vsel %vm232, %v229, %v231
        %238 = vst [vmem:[#allocation2 + $0x18] sm:$0xf0] %v233
        %239 = vst [vmem:[#allocation2 + $0x20] sm:$0xf0] %v234
        %240 = vst.msk [vmem:[#allocation2 + $0x28] sm:$0xf0] %vm198, %v231
        %v241 = vld [vmem:[%s168] sm:$0xff]
        %v242 = vld [vmem:[%s168 + $0x8] sm:$0xf]
        %v245 = vcombine.high %v241, %v241
        %246 = vrot.lane.b32.xlu0 %v241, 109
        %v247 = vpop.permute.xlu0 %246
        %248 = vrot.lane.b32.xlu0 %v245, 109
        %v249 = vpop.permute.xlu0 %248
        %250 = vrot.lane.b32.xlu0 %v242, 109
        %v251 = vpop.permute.xlu0 %250
        %vm252 = vcmask 891904
        %v253 = vsel %vm252, %v247, %v249
        %v254 = vsel %vm252, %v249, %v251
        %258 = vst [vmem:[#allocation2 + $0x30] sm:$0xf] %v253
        %259 = vst [vmem:[#allocation2 + $0x38] sm:$0xf] %v254
        %260 = vst.msk [vmem:[#allocation2 + $0x40] sm:$0xf] %vm176, %v251
        %v261 = vld [vmem:[%s168] sm:$0xff]
        %v262 = vld [vmem:[%s168 + $0x8] sm:$0xf]
        %v265 = vcombine.low %v261, %v261
        %v266 = vcombine.low %v262, %v262
        %267 = vrot.lane.b32.xlu0 %v265, 108
        %v268 = vpop.permute.xlu0 %267
        %269 = vrot.lane.b32.xlu0 %v261, 108
        %v270 = vpop.permute.xlu0 %269
        %271 = vrot.lane.b32.xlu0 %v266, 108
        %v272 = vpop.permute.xlu0 %271
        %vm273 = vcmask 883712
        %v274 = vsel %vm273, %v268, %v270
        %v275 = vsel %vm273, %v270, %v272
        %279 = vst [vmem:[#allocation2 + $0x30] sm:$0xf0] %v274
        %280 = vst [vmem:[#allocation2 + $0x38] sm:$0xf0] %v275
        %281 = vst.msk [vmem:[#allocation2 + $0x40] sm:$0xf0] %vm198, %v272
        %v282 = vld [vmem:[%s168] sm:$0xff]
        %v283 = vld [vmem:[%s168 + $0x8] sm:$0xf]
        %v286 = vcombine.high %v282, %v282
        %287 = vrot.lane.b32.xlu0 %v282, 92
        %v288 = vpop.permute.xlu0 %287
        %289 = vrot.lane.b32.xlu0 %v286, 92
        %v290 = vpop.permute.xlu0 %289
        %291 = vrot.lane.b32.xlu0 %v283, 92
        %v292 = vpop.permute.xlu0 %291
        %vm293 = vcmask 752640
        %v294 = vsel %vm293, %v288, %v290
        %v295 = vsel %vm293, %v290, %v292
        %299 = vst [vmem:[#allocation2 + $0x48] sm:$0xf] %v294
        %300 = vst [vmem:[#allocation2 + $0x50] sm:$0xf] %v295
        %301 = vst.msk [vmem:[#allocation2 + $0x58] sm:$0xf] %vm176, %v292
        %v302 = vld [vmem:[%s168] sm:$0xff]
        %v303 = vld [vmem:[%s168 + $0x8] sm:$0xf]
        %v306 = vcombine.low %v302, %v302
        %v307 = vcombine.low %v303, %v303
        %308 = vrot.lane.b32.xlu0 %v306, 91
        %v309 = vpop.permute.xlu0 %308
        %310 = vrot.lane.b32.xlu0 %v302, 91
        %v311 = vpop.permute.xlu0 %310
        %312 = vrot.lane.b32.xlu0 %v307, 91
        %v313 = vpop.permute.xlu0 %312
        %vm314 = vcmask 744448
        %v315 = vsel %vm314, %v309, %v311
        %v316 = vsel %vm314, %v311, %v313
        %320 = vst [vmem:[#allocation2 + $0x48] sm:$0xf0] %v315
        %321 = vst [vmem:[#allocation2 + $0x50] sm:$0xf0] %v316
        %322 = vst.msk [vmem:[#allocation2 + $0x58] sm:$0xf0] %vm198, %v313
        %v323 = vld [vmem:[%s168] sm:$0xff]
        %v324 = vld [vmem:[%s168 + $0x8] sm:$0xf]
        %v327 = vcombine.high %v323, %v323
        %328 = vrot.lane.b32.xlu0 %v323, 90
        %v329 = vpop.permute.xlu0 %328
        %330 = vrot.lane.b32.xlu0 %v327, 90
        %v331 = vpop.permute.xlu0 %330
        %332 = vrot.lane.b32.xlu0 %v324, 90
        %v333 = vpop.permute.xlu0 %332
        %vm334 = vcmask 736256
        %v335 = vsel %vm334, %v329, %v331
        %v336 = vsel %vm334, %v331, %v333
        %340 = vst [vmem:[#allocation2 + $0x60] sm:$0xf] %v335
        %341 = vst [vmem:[#allocation2 + $0x68] sm:$0xf] %v336
        %342 = vst.msk [vmem:[#allocation2 + $0x70] sm:$0xf] %vm176, %v333
        %v343 = vld [vmem:[%s1] sm:$0xff]
        %v344 = vld [vmem:[#allocation2] sm:$0xff]
        %v345 = vld [vmem:[#allocation2 + $0x8] sm:$0xff]
        %v346 = vld [vmem:[#allocation2 + $0x10] sm:$0xff]
        %v347 = vld [vmem:[#allocation2 + $0x18] sm:$0xff]
        %v348 = vld [vmem:[#allocation2 + $0x20] sm:$0xff]
        %v349 = vld [vmem:[#allocation2 + $0x28] sm:$0xff]
        %v350 = vld [vmem:[#allocation2 + $0x30] sm:$0xff]
        %v351 = vld [vmem:[#allocation2 + $0x38] sm:$0xff]
        %v352 = vld [vmem:[#allocation2 + $0x40] sm:$0xff]
        %v353 = vld [vmem:[#allocation2 + $0x48] sm:$0xff]
        %v354 = vld [vmem:[#allocation2 + $0x50] sm:$0xff]
        %v355 = vld [vmem:[#allocation2 + $0x58] sm:$0xff]
        %v356 = vld [vmem:[#allocation2 + $0x60] sm:$0xf]
        %v357 = vld [vmem:[#allocation2 + $0x68] sm:$0xf]
        %v358 = vld [vmem:[#allocation2 + $0x70] sm:$0xf]
        %v359 = vld [vmem:[%s2] sm:$0xff]
        %361 = vset.pattern.permute.xlu0 0
        %362 = vperm.xlu0 %361, %v359
        %v363 = vpop.permute.xlu0 %362
        %vm365 = vcmask 293888
        %v367 = vsel %vm365, %v343, 0
        %vm369 = vcmask 1043456
        %v371 = vsel %vm369, %v356, 0
        %v374 = vsel %vm369, %v357, 0
        %v377 = vsel %vm369, %v358, 0
        %379 = vmatprep.subr.mxu0 0.0
        %380 = vmatpush1.msra.mxu0 0.0
        %381 = vmatprep.subr.mxu0 0.0
        %382 = vmatpush1.msra.mxu0 0.0
        %383 = vmatprep.subr.mxu0 0.0
        %384 = vmatpush1.msra.mxu0 0.0
        %385 = vmatprep.subr.mxu0 0.0
        %386 = vmatpush1.msra.mxu0 0.0
        %387 = vmatprep.subr.mxu0 0.0
        %388 = vmatpush1.msra.mxu0 0.0
        %389 = vmatprep.subr.mxu0 0.0
        %390 = vmatpush1.msra.mxu0 0.0
        %391 = vmatprep.subr.mxu0 0.0
        %392 = vmatpush1.msra.mxu0 0.0
        %393 = vmatprep.subr.mxu0 0.0
        %394 = vmatpush1.msra.mxu0 0.0
        %395 = vmatprep.subr.mxu0 0.0
        %396 = vmatpush1.msra.mxu0 0.0
        %397 = vmatprep.subr.mxu0 0.0
        %398 = vmatpush1.msra.mxu0 0.0
        %399 = vmatprep.subr.mxu0 0.0
        %400 = vmatpush1.msra.mxu0 0.0
        %401 = vmatprep.subr.mxu0 %v374
        %402 = vmatpush1.msra.mxu0 %v371
        %403 = vmatprep.subr.mxu0 %v354
        %404 = vmatpush1.msra.mxu0 %v353
        %405 = vmatprep.subr.mxu0 %v351
        %406 = vmatpush1.msra.mxu0 %v350
        %407 = vmatprep.subr.mxu0 %v348
        %408 = vmatpush1.msra.mxu0 %v347
        %409 = vmatprep.subr.mxu0 %v345
        %410 = vmatpush1.msra.mxu0 %v344
        %411 = vmatprep.subr.mxu0 0.0
        %412 = vmatpush2.msra.mxu0 0.0
        %413 = vmatprep.subr.mxu0 0.0
        %414 = vmatpush2.msra.mxu0 0.0
        %415 = vmatprep.subr.mxu0 0.0
        %416 = vmatpush2.msra.mxu0 0.0
        %417 = vmatprep.subr.mxu0 0.0
        %418 = vmatpush2.msra.mxu0 0.0
        %419 = vmatprep.subr.mxu0 0.0
        %420 = vmatpush2.msra.mxu0 0.0
        %421 = vmatprep.subr.mxu0 0.0
        %422 = vmatpush2.msra.mxu0 0.0
        %423 = vmatprep.subr.mxu0 0.0
        %424 = vmatpush2.msra.mxu0 0.0
        %425 = vmatprep.subr.mxu0 0.0
        %426 = vmatpush2.msra.mxu0 0.0
        %427 = vmatprep.subr.mxu0 0.0
        %428 = vmatpush2.msra.mxu0 0.0
        %429 = vmatprep.subr.mxu0 0.0
        %430 = vmatpush2.msra.mxu0 0.0
        %431 = vmatprep.subr.mxu0 0.0
        %432 = vmatpush2.msra.mxu0 0.0
        %433 = vmatprep.subr.mxu0 0.0
        %434 = vmatpush2.msra.mxu0 0.0
        %435 = vmatprep.subr.mxu0 0.0
        %436 = vmatpush2.msra.mxu0 0.0
        %437 = vmatprep.subr.mxu0 0.0
        %438 = vmatpush2.msra.mxu0 0.0
        %439 = vmatprep.subr.mxu0 0.0
        %440 = vmatpush2.msra.mxu0 0.0
        %441 = vmatprep.subr.mxu0 0.0
        %442 = vmatpush2.msra.mxu0 0.0
        %443 = vmatprep.mubr.f32.mxu0 0.0
        %444 = vmatmul.mubr.f32.gmra.mxu0 %v367
        %v445 = vpop.f32.mrf.mxu0
        %v446 = vadd.f32 %v363, %v445
        %v447 = vpop.f32.mrf.mxu0
        %v448 = vadd.f32 %v363, %v447
        %449 = vdwg.mxu0
        %450 = vmatprep.subr.mxu0 0.0
        %451 = vmatpush1.msra.mxu0 0.0
        %452 = vmatprep.subr.mxu0 0.0
        %453 = vmatpush1.msra.mxu0 0.0
        %454 = vmatprep.subr.mxu0 0.0
        %455 = vmatpush1.msra.mxu0 0.0
        %456 = vmatprep.subr.mxu0 0.0
        %457 = vmatpush1.msra.mxu0 0.0
        %458 = vmatprep.subr.mxu0 0.0
        %459 = vmatpush1.msra.mxu0 0.0
        %460 = vmatprep.subr.mxu0 0.0
        %461 = vmatpush1.msra.mxu0 0.0
        %462 = vmatprep.subr.mxu0 0.0
        %463 = vmatpush1.msra.mxu0 0.0
        %464 = vmatprep.subr.mxu0 0.0
        %465 = vmatpush1.msra.mxu0 0.0
        %466 = vmatprep.subr.mxu0 0.0
        %467 = vmatpush1.msra.mxu0 0.0
        %468 = vmatprep.subr.mxu0 0.0
        %469 = vmatpush1.msra.mxu0 0.0
        %470 = vmatprep.subr.mxu0 0.0
        %471 = vmatpush1.msra.mxu0 0.0
        %472 = vmatprep.subr.mxu0 0.0
        %473 = vmatpush1.msra.mxu0 %v377
        %474 = vmatprep.subr.mxu0 0.0
        %475 = vmatpush1.msra.mxu0 %v355
        %476 = vmatprep.subr.mxu0 0.0
        %477 = vmatpush1.msra.mxu0 %v352
        %478 = vmatprep.subr.mxu0 0.0
        %479 = vmatpush1.msra.mxu0 %v349
        %480 = vmatprep.subr.mxu0 0.0
        %481 = vmatpush1.msra.mxu0 %v346
        %482 = vmatprep.subr.mxu0 0.0
        %483 = vmatpush2.msra.mxu0 0.0
        %484 = vmatprep.subr.mxu0 0.0
        %485 = vmatpush2.msra.mxu0 0.0
        %486 = vmatprep.subr.mxu0 0.0
        %487 = vmatpush2.msra.mxu0 0.0
        %488 = vmatprep.subr.mxu0 0.0
        %489 = vmatpush2.msra.mxu0 0.0
        %490 = vmatprep.subr.mxu0 0.0
        %491 = vmatpush2.msra.mxu0 0.0
        %492 = vmatprep.subr.mxu0 0.0
        %493 = vmatpush2.msra.mxu0 0.0
        %494 = vmatprep.subr.mxu0 0.0
        %495 = vmatpush2.msra.mxu0 0.0
        %496 = vmatprep.subr.mxu0 0.0
        %497 = vmatpush2.msra.mxu0 0.0
        %498 = vmatprep.subr.mxu0 0.0
        %499 = vmatpush2.msra.mxu0 0.0
        %500 = vmatprep.subr.mxu0 0.0
        %501 = vmatpush2.msra.mxu0 0.0
        %502 = vmatprep.subr.mxu0 0.0
        %503 = vmatpush2.msra.mxu0 0.0
        %504 = vmatprep.subr.mxu0 0.0
        %505 = vmatpush2.msra.mxu0 0.0
        %506 = vmatprep.subr.mxu0 0.0
        %507 = vmatpush2.msra.mxu0 0.0
        %508 = vmatprep.subr.mxu0 0.0
        %509 = vmatpush2.msra.mxu0 0.0
        %510 = vmatprep.subr.mxu0 0.0
        %511 = vmatpush2.msra.mxu0 0.0
        %512 = vmatprep.subr.mxu0 0.0
        %513 = vmatpush2.msra.mxu0 0.0
        %514 = vmatprep.mubr.f32.mxu0 0.0
        %515 = vmatmul.mubr.f32.gmra.mxu0 %v367
        %v516 = vpop.f32.mrf.mxu0
        %v517 = vadd.f32 %v363, %v516
        %v518 = vpop.f32.mrf.mxu0
        %519 = vdwg.mxu0
        %521 = vrot.lane.b32.xlu0 %v446, 110
        %v522 = vpop.permute.xlu0 %521
        %524 = vrot.lane.b32.xlu0 %v446, 92
        %v525 = vpop.permute.xlu0 %524
        %527 = vrot.lane.b32.xlu0 %v446, 74
        %v528 = vpop.permute.xlu0 %527
        %530 = vrot.lane.b32.xlu0 %v446, 56
        %v531 = vpop.permute.xlu0 %530
        %533 = vrot.lane.b32.xlu0 %v446, 38
        %v534 = vpop.permute.xlu0 %533
        %536 = vrot.lane.b32.xlu0 %v446, 20
        %v537 = vpop.permute.xlu0 %536
        %540 = vrot.lane.b32.xlu0 %v446, 2
        %v541 = vpop.permute.xlu0 %540
        %542 = vrot.lane.b32.xlu0 %v448, 2
        %v543 = vpop.permute.xlu0 %542
        %vm544 = vcmask 15360
        %v545 = vsel %vm544, %v541, %v543
        %547 = vrot.lane.b32.xlu0 %v448, 112
        %v548 = vpop.permute.xlu0 %547
        %550 = vrot.lane.b32.xlu0 %v448, 94
        %v551 = vpop.permute.xlu0 %550
        %553 = vrot.lane.b32.xlu0 %v448, 76
        %v554 = vpop.permute.xlu0 %553
        %556 = vrot.lane.b32.xlu0 %v448, 58
        %v557 = vpop.permute.xlu0 %556
        %559 = vrot.lane.b32.xlu0 %v448, 40
        %v560 = vpop.permute.xlu0 %559
        %562 = vrot.lane.b32.xlu0 %v448, 22
        %v563 = vpop.permute.xlu0 %562
        %566 = vrot.lane.b32.xlu0 %v448, 4
        %v567 = vpop.permute.xlu0 %566
        %568 = vrot.lane.b32.xlu0 %v517, 4
        %v569 = vpop.permute.xlu0 %568
        %vm570 = vcmask 31744
        %v571 = vsel %vm570, %v567, %v569
        %573 = vrot.lane.b32.xlu0 %v517, 114
        %v574 = vpop.permute.xlu0 %573
        %v576 = vcombine.low %v446, %v525
        %v577 = vcombine.high %v446, %v525
        %v579 = vunpack.c.l.s4 1983009808
        %v580 = vunpack.c.0.s8 %v579
        %v581 = vlaneseq
        %v582 = vshrl.u32 %v581, 7
        %v583 = vsub.s32 %v580, %v582
        %v584 = vrot.slane %v576, %v583
        %v586 = vunpack.c.l.s4 1983009808
        %v587 = vunpack.c.0.s8 %v586
        %v588 = vlaneseq
        %v589 = vshrl.u32 %v588, 7
        %v590 = vsub.s32 %v587, %v589
        %v591 = vrot.slane %v577, %v590
        %v592 = vcombine.low %v522, %v528
        %v593 = vcombine.high %v522, %v528
        %v595 = vunpack.c.l.s4 1983009808
        %v596 = vunpack.c.0.s8 %v595
        %v597 = vlaneseq
        %v598 = vshrl.u32 %v597, 7
        %v599 = vsub.s32 %v596, %v598
        %v600 = vrot.slane %v592, %v599
        %v602 = vunpack.c.l.s4 1983009808
        %v603 = vunpack.c.0.s8 %v602
        %v604 = vlaneseq
        %v605 = vshrl.u32 %v604, 7
        %v606 = vsub.s32 %v603, %v605
        %v607 = vrot.slane %v593, %v606
        %v608 = vcombine.low %v531, %v537
        %v609 = vcombine.high %v531, %v537
        %v611 = vunpack.c.l.s4 1983009808
        %v612 = vunpack.c.0.s8 %v611
        %v613 = vlaneseq
        %v614 = vshrl.u32 %v613, 7
        %v615 = vsub.s32 %v612, %v614
        %v616 = vrot.slane %v608, %v615
        %v618 = vunpack.c.l.s4 1983009808
        %v619 = vunpack.c.0.s8 %v618
        %v620 = vlaneseq
        %v621 = vshrl.u32 %v620, 7
        %v622 = vsub.s32 %v619, %v621
        %v623 = vrot.slane %v609, %v622
        %v624 = vcombine.low %v534, %v545
        %v625 = vcombine.high %v534, %v545
        %v627 = vunpack.c.l.s4 1983009808
        %v628 = vunpack.c.0.s8 %v627
        %v629 = vlaneseq
        %v630 = vshrl.u32 %v629, 7
        %v631 = vsub.s32 %v628, %v630
        %v632 = vrot.slane %v624, %v631
        %v634 = vunpack.c.l.s4 1983009808
        %v635 = vunpack.c.0.s8 %v634
        %v636 = vlaneseq
        %v637 = vshrl.u32 %v636, 7
        %v638 = vsub.s32 %v635, %v637
        %v639 = vrot.slane %v625, %v638
        %v640 = vcombine.low %v584, %v600
        %v641 = vcombine.high %v584, %v600
        %v643 = vunpack.c.l.s4 1934713408
        %v644 = vunpack.c.0.s8 %v643
        %v645 = vlaneseq
        %v646 = vshrl.u32 %v645, 7
        %v647 = vsub.s32 %v644, %v646
        %v648 = vrot.slane %v640, %v647
        %v650 = vunpack.c.l.s4 1934713408
        %v651 = vunpack.c.0.s8 %v650
        %v652 = vlaneseq
        %v653 = vshrl.u32 %v652, 7
        %v654 = vsub.s32 %v651, %v653
        %v655 = vrot.slane %v641, %v654
        %v656 = vcombine.low %v591, %v607
        %v657 = vcombine.high %v591, %v607
        %v659 = vunpack.c.l.s4 1934713408
        %v660 = vunpack.c.0.s8 %v659
        %v661 = vlaneseq
        %v662 = vshrl.u32 %v661, 7
        %v663 = vsub.s32 %v660, %v662
        %v664 = vrot.slane %v656, %v663
        %v666 = vunpack.c.l.s4 1934713408
        %v667 = vunpack.c.0.s8 %v666
        %v668 = vlaneseq
        %v669 = vshrl.u32 %v668, 7
        %v670 = vsub.s32 %v667, %v669
        %v671 = vrot.slane %v657, %v670
        %v672 = vcombine.low %v616, %v632
        %v673 = vcombine.high %v616, %v632
        %v675 = vunpack.c.l.s4 1934713408
        %v676 = vunpack.c.0.s8 %v675
        %v677 = vlaneseq
        %v678 = vshrl.u32 %v677, 7
        %v679 = vsub.s32 %v676, %v678
        %v680 = vrot.slane %v672, %v679
        %v682 = vunpack.c.l.s4 1934713408
        %v683 = vunpack.c.0.s8 %v682
        %v684 = vlaneseq
        %v685 = vshrl.u32 %v684, 7
        %v686 = vsub.s32 %v683, %v685
        %v687 = vrot.slane %v673, %v686
        %v688 = vcombine.low %v623, %v639
        %v689 = vcombine.high %v623, %v639
        %v691 = vunpack.c.l.s4 1934713408
        %v692 = vunpack.c.0.s8 %v691
        %v693 = vlaneseq
        %v694 = vshrl.u32 %v693, 7
        %v695 = vsub.s32 %v692, %v694
        %v696 = vrot.slane %v688, %v695
        %v698 = vunpack.c.l.s4 1934713408
        %v699 = vunpack.c.0.s8 %v698
        %v700 = vlaneseq
        %v701 = vshrl.u32 %v700, 7
        %v702 = vsub.s32 %v699, %v701
        %v703 = vrot.slane %v689, %v702
        %v704 = vcombine.low %v648, %v680
        %v705 = vcombine.high %v648, %v680
        %v706 = vcombine.low %v655, %v687
        %v707 = vcombine.high %v655, %v687
        %v708 = vcombine.low %v664, %v696
        %v709 = vcombine.high %v664, %v696
        %v710 = vcombine.low %v671, %v703
        %v711 = vcombine.high %v671, %v703
        %v712 = vcombine.low %v548, %v554
        %v713 = vcombine.high %v548, %v554
        %v715 = vunpack.c.l.s4 1983009808
        %v716 = vunpack.c.0.s8 %v715
        %v717 = vlaneseq
        %v718 = vshrl.u32 %v717, 7
        %v719 = vsub.s32 %v716, %v718
        %v720 = vrot.slane %v712, %v719
        %v722 = vunpack.c.l.s4 1983009808
        %v723 = vunpack.c.0.s8 %v722
        %v724 = vlaneseq
        %v725 = vshrl.u32 %v724, 7
        %v726 = vsub.s32 %v723, %v725
        %v727 = vrot.slane %v713, %v726
        %v728 = vcombine.low %v551, %v557
        %v729 = vcombine.high %v551, %v557
        %v731 = vunpack.c.l.s4 1983009808
        %v732 = vunpack.c.0.s8 %v731
        %v733 = vlaneseq
        %v734 = vshrl.u32 %v733, 7
        %v735 = vsub.s32 %v732, %v734
        %v736 = vrot.slane %v728, %v735
        %v738 = vunpack.c.l.s4 1983009808
        %v739 = vunpack.c.0.s8 %v738
        %v740 = vlaneseq
        %v741 = vshrl.u32 %v740, 7
        %v742 = vsub.s32 %v739, %v741
        %v743 = vrot.slane %v729, %v742
        %v744 = vcombine.low %v560, %v571
        %v745 = vcombine.high %v560, %v571
        %v747 = vunpack.c.l.s4 1983009808
        %v748 = vunpack.c.0.s8 %v747
        %v749 = vlaneseq
        %v750 = vshrl.u32 %v749, 7
        %v751 = vsub.s32 %v748, %v750
        %v752 = vrot.slane %v744, %v751
        %v754 = vunpack.c.l.s4 1983009808
        %v755 = vunpack.c.0.s8 %v754
        %v756 = vlaneseq
        %v757 = vshrl.u32 %v756, 7
        %v758 = vsub.s32 %v755, %v757
        %v759 = vrot.slane %v745, %v758
        %v760 = vcombine.low %v563, %v574
        %v761 = vcombine.high %v563, %v574
        %v763 = vunpack.c.l.s4 1983009808
        %v764 = vunpack.c.0.s8 %v763
        %v765 = vlaneseq
        %v766 = vshrl.u32 %v765, 7
        %v767 = vsub.s32 %v764, %v766
        %v768 = vrot.slane %v760, %v767
        %v770 = vunpack.c.l.s4 1983009808
        %v771 = vunpack.c.0.s8 %v770
        %v772 = vlaneseq
        %v773 = vshrl.u32 %v772, 7
        %v774 = vsub.s32 %v771, %v773
        %v775 = vrot.slane %v761, %v774
        %v776 = vcombine.low %v720, %v736
        %v777 = vcombine.high %v720, %v736
        %v779 = vunpack.c.l.s4 1934713408
        %v780 = vunpack.c.0.s8 %v779
        %v781 = vlaneseq
        %v782 = vshrl.u32 %v781, 7
        %v783 = vsub.s32 %v780, %v782
        %v784 = vrot.slane %v776, %v783
        %v786 = vunpack.c.l.s4 1934713408
        %v787 = vunpack.c.0.s8 %v786
        %v788 = vlaneseq
        %v789 = vshrl.u32 %v788, 7
        %v790 = vsub.s32 %v787, %v789
        %v791 = vrot.slane %v777, %v790
        %v792 = vcombine.low %v727, %v743
        %v793 = vcombine.high %v727, %v743
        %v795 = vunpack.c.l.s4 1934713408
        %v796 = vunpack.c.0.s8 %v795
        %v797 = vlaneseq
        %v798 = vshrl.u32 %v797, 7
        %v799 = vsub.s32 %v796, %v798
        %v800 = vrot.slane %v792, %v799
        %v802 = vunpack.c.l.s4 1934713408
        %v803 = vunpack.c.0.s8 %v802
        %v804 = vlaneseq
        %v805 = vshrl.u32 %v804, 7
        %v806 = vsub.s32 %v803, %v805
        %v807 = vrot.slane %v793, %v806
        %v808 = vcombine.low %v752, %v768
        %v809 = vcombine.high %v752, %v768
        %v811 = vunpack.c.l.s4 1934713408
        %v812 = vunpack.c.0.s8 %v811
        %v813 = vlaneseq
        %v814 = vshrl.u32 %v813, 7
        %v815 = vsub.s32 %v812, %v814
        %v816 = vrot.slane %v808, %v815
        %v818 = vunpack.c.l.s4 1934713408
        %v819 = vunpack.c.0.s8 %v818
        %v820 = vlaneseq
        %v821 = vshrl.u32 %v820, 7
        %v822 = vsub.s32 %v819, %v821
        %v823 = vrot.slane %v809, %v822
        %v824 = vcombine.low %v759, %v775
        %v825 = vcombine.high %v759, %v775
        %v827 = vunpack.c.l.s4 1934713408
        %v828 = vunpack.c.0.s8 %v827
        %v829 = vlaneseq
        %v830 = vshrl.u32 %v829, 7
        %v831 = vsub.s32 %v828, %v830
        %v832 = vrot.slane %v824, %v831
        %v834 = vunpack.c.l.s4 1934713408
        %v835 = vunpack.c.0.s8 %v834
        %v836 = vlaneseq
        %v837 = vshrl.u32 %v836, 7
        %v838 = vsub.s32 %v835, %v837
        %v839 = vrot.slane %v825, %v838
        %v840 = vcombine.low %v784, %v816
        %v841 = vcombine.high %v784, %v816
        %v842 = vcombine.low %v791, %v823
        %v843 = vcombine.high %v791, %v823
        %v844 = vcombine.low %v800, %v832
        %v845 = vcombine.high %v800, %v832
        %v846 = vcombine.low %v807, %v839
        %v847 = vcombine.high %v807, %v839
        %vm848 = vcmask 130048
        %849 = vst.msk [vmem:[%s163] sm:$0xff] %vm848, %v704
        %850 = vst.msk [vmem:[%s163 + $0x8] sm:$0xff] %vm848, %v840
        %851 = vst.msk [vmem:[%s163 + $0x10] sm:$0xff] %vm848, %v705
        %852 = vst.msk [vmem:[%s163 + $0x18] sm:$0xff] %vm848, %v841
        %853 = vst.msk [vmem:[%s163 + $0x20] sm:$0xff] %vm848, %v706
        %854 = vst.msk [vmem:[%s163 + $0x28] sm:$0xff] %vm848, %v842
        %855 = vst.msk [vmem:[%s163 + $0x30] sm:$0xff] %vm848, %v707
        %856 = vst.msk [vmem:[%s163 + $0x38] sm:$0xff] %vm848, %v843
        %857 = vst.msk [vmem:[%s163 + $0x40] sm:$0xff] %vm848, %v708
        %858 = vst.msk [vmem:[%s163 + $0x48] sm:$0xff] %vm848, %v844
        %859 = vst.msk [vmem:[%s163 + $0x50] sm:$0xff] %vm848, %v709
        %860 = vst.msk [vmem:[%s163 + $0x58] sm:$0xff] %vm848, %v845
        %861 = vst.msk [vmem:[%s163 + $0x60] sm:$0xff] %vm848, %v710
        %862 = vst.msk [vmem:[%s163 + $0x68] sm:$0xff] %vm848, %v846
        %863 = vst.msk [vmem:[%s163 + $0x70] sm:$0xff] %vm848, %v711
        %864 = vst.msk [vmem:[%s163 + $0x78] sm:$0xff] %vm848, %v847
        %s865 = sand.u32 %s93, 1
        %s866 = scalar_lea.sflag [#allocation4], %s865
        %s867 = sand.u32 %s93, 1
        %s868 = smul.addr %s867, 128
        %s869 = scalar_lea.vmem [#allocation3], %s868
        // Predicated region
        $region33: #{conv_block_forward.1} parent=31 // pred_check
          %p870 = pneg %p103
        $region34: #{conv_block_forward.1} parent=31 // pred_check_branch
          %872 = sbr.rel (%p870) target = $region36
        $region35: #{conv_block_forward.1} parent=31 // pred_region
          %s874 = ssub.s32 2048, 2048
          %875 = vsyncadd %s866, %s874
          %s876 = smul.addr %s17, 16
          %s877 = smul.addr %s876, 128
          %s878 = scalar_lea.hbm %s3, %s877
          %s879 = sshll.u32 %s869, 4
          %s880 = int_to_ptr.vmem [resolvable:$true] %s879
          %885 = dma.vmem_to_hbm [thread:$0]  %s880, 2048, %s878, %s866, 128, 128, 8
        $region36: #{conv_block_forward.1} parent=31 // pred_fallthru
          _
      $region32: #{conv_block_forward.1} parent=5 // pred_fallthru
        _
      %p886 = scmp.le.s32.totalorder 2, %s12
      // Predicated region
      $region37: #{conv_block_forward.1} parent=5 // pred_check
        %p887 = pneg %p886
      $region38: #{conv_block_forward.1} parent=5 // pred_check_branch
        %889 = sbr.rel (%p887) target = $region40
      $region39: #{conv_block_forward.1} parent=5 // pred_region
        %s890 = ssub.s32 %s12, 2
        // Predicated region
        $region41: #{conv_block_forward.1} parent=39 // pred_check
          %p891 = pneg %p109
        $region42: #{conv_block_forward.1} parent=39 // pred_check_branch
          %893 = sbr.rel (%p891) target = $region44
        $region43: #{conv_block_forward.1} parent=39 // pred_region
          %s894 = sand.u32 %s94, 1
          %s895 = scalar_lea.sflag [#allocation4], %s894
          %s896 = sand.u32 %s94, 1
          %s897 = smul.addr %s896, 128
          %s898 = scalar_lea.vmem [#allocation3], %s897
          %899 = dma.done %s895, 2048
        $region44: #{conv_block_forward.1} parent=39 // pred_fallthru
          _
      $region40: #{conv_block_forward.1} parent=5 // pred_fallthru
        _
    $region6: #{conv_block_forward.1} parent=1 // loop_footer
      %s16 = sadd.s32 1, %s12
    $region7: #{conv_block_forward.1} parent=1 // loop_footer_branch
      %11 = sbr.rel target = $region3
    $region8: #{conv_block_forward.1} parent=1 // loop_exit
      _
    %900 = vsyncpa [#allocation4], 1
    %s901 = scalar_lea.sflag [#allocation4], 1
    %902 = vsyncpa %s901, 1

</llo_original>
